<compile_context>
chip_gen: v7x
topology: tpu7x:2x2x1
jax: 0.10.0
libtpu: 0.0.40
codegen_flags: <defaults>
</compile_context>

<pallas_src>
import enum
import functools

import jax
import jax.numpy as jnp
from jax import lax
from jax.experimental import pallas as pl
from jax.experimental.pallas import tpu as pltpu


class TripletVectorField(enum.Enum):
    E_IJ = "e_ij"
    E_IK = "e_ik"
    CROSS = "cross"


_ROWS_IN = 15     # 3 (e_ij) + 3 (e_ik) + 9 (cell, row-major)
_LANES = 512      # lane width of the triplet layout (multiple of 128)
_MAX_TILE_R = 64  # 64 rows x 512 lanes = 32768 triplets per grid step


def _vector_fields_kernel(in_ref, out_ref, *, fields, normalize, eps):
    # in_ref : [15, tile_r, C]   out_ref : [F*3, tile_r, C]
    # Every channel slice below is a dense [tile_r, C] tile (full vregs).
    def ch(r):
        return in_ref[r].astype(jnp.float32)     # [tile_r, C]

    e_ij = [ch(0), ch(1), ch(2)]
    e_ik = [ch(3), ch(4), ch(5)]
    cell = [ch(6 + k) for k in range(9)]          # cell[i, j] at 6 + i*3 + j

    def to_cartesian(e):
        # v_j = sum_i e_i * cell[i, j]   (row-vector convention: e @ cell)
        return [e[0] * cell[0 * 3 + j]
                + e[1] * cell[1 * 3 + j]
                + e[2] * cell[2 * 3 + j] for j in range(3)]

    v_ij = to_cartesian(e_ij)
    v_ik = to_cartesian(e_ik)

    def cross(a, b):
        return [a[1] * b[2] - a[2] * b[1],
                a[2] * b[0] - a[0] * b[2],
                a[0] * b[1] - a[1] * b[0]]

    def maybe_normalize(v):
        if not normalize:
            return v
        nrm_sq = v[0] * v[0] + v[1] * v[1] + v[2] * v[2]
        # 1 / max(||v||, eps) == rsqrt(max(||v||^2, eps^2)); eps^2 = 1e-24 is
        # still a normal f32. Runs on the EUP slot instead of sqrt + divide.
        inv = lax.rsqrt(jnp.maximum(nrm_sq, eps * eps))
        return [vc * inv for vc in v]

    idx = 0
    for f in fields:                              # static Python loop (traced once)
        if f == TripletVectorField.E_IJ:
            v = v_ij
        elif f == TripletVectorField.E_IK:
            v = v_ik
        elif f == TripletVectorField.CROSS:
            v = cross(v_ij, v_ik)
        else:
            raise ValueError(f"unknown vector field {f}")
        v = maybe_normalize(v)
        for j in range(3):
            # Unmasked full-tile store per output channel.
            out_ref[idx] = v[j].astype(out_ref.dtype)
            idx += 1


def _pick_layout(n_triplets, lanes=_LANES, max_tile_r=_MAX_TILE_R):
    """Lay T triplets out as [rows_pad, lanes]; pick the sublane tile and grid.

    rows_pad is a multiple of 8 (sublane-dense tiles); when the grid has more
    than one step it is made even so v7x's two TensorCores get balanced work.
    """
    rows = pl.cdiv(max(int(n_triplets), 1), lanes)
    rows = pl.cdiv(rows, 8) * 8                   # sublane multiple of 8
    tile_r = min(max_tile_r, rows)
    grid = pl.cdiv(rows, tile_r)
    if grid > 1 and grid % 2 == 1:                # even grid for megacore balance
        grid += 1
    rows_pad = grid * tile_r
    return lanes, int(tile_r), int(rows_pad), int(grid)


@functools.partial(jax.jit, static_argnames=("fields", "normalize"))
def vector_fields_pallas(cell, batch_triplets, e_ij, e_ik, *,
                         fields, normalize=True):
    """cell: [G,3,3] f32, batch_triplets: [T] int, e_ij/e_ik: [T,3]
       -> [T, len(fields), 3] f32"""
    fields = tuple(fields)
    n_fields = len(fields)
    if n_fields == 0:
        raise ValueError("fields must be a non-empty tuple of TripletVectorField")
    T = e_ij.shape[0]
    if T == 0:
        return jnp.zeros((0, n_fields, 3), jnp.float32)

    lanes, tile_r, rows_pad, grid = _pick_layout(T)
    t_pad = rows_pad * lanes

    # --- glue (fused under this jit): gather per-triplet cell, stack all
    #     per-triplet data into one 15-channel, lane-major slab ----------------
    # TODO(synk): for small graph counts the 9 replicated cell rows could be
    # replaced by a whole-cell VMEM operand + in-kernel gather to cut input
    # traffic by ~half; kept replicated here for generality.
    cell_t = cell[batch_triplets].reshape(T, 9)                        # [T, 9]
    stacked = jnp.concatenate(
        [e_ij.astype(jnp.float32),
         e_ik.astype(jnp.float32),
         cell_t.astype(jnp.float32)], axis=1)                          # [T, 15]
    stacked = jnp.pad(stacked, ((0, t_pad - T), (0, 0)))               # [T_pad, 15]
    stacked = jnp.transpose(stacked).reshape(_ROWS_IN, rows_pad, lanes)

    kernel = functools.partial(_vector_fields_kernel,
                               fields=fields, normalize=normalize, eps=1e-12)

    out = pl.pallas_call(
        kernel,
        out_shape=jax.ShapeDtypeStruct((n_fields * 3, rows_pad, lanes),
                                       jnp.float32),
        grid_spec=pltpu.PrefetchScalarGridSpec(
            num_scalar_prefetch=0,
            grid=(grid,),
            in_specs=[pl.BlockSpec((_ROWS_IN, tile_r, lanes),
                                   lambda r: (0, r, 0))],
            out_specs=pl.BlockSpec((n_fields * 3, tile_r, lanes),
                                   lambda r: (0, r, 0)),
        ),
        compiler_params=pltpu.CompilerParams(
            dimension_semantics=("parallel",)),
    )(stacked)

    # [F*3, rows_pad, C] -> [F*3, T] -> [T, F, 3]   (fused under this jit)
    out = out.reshape(n_fields * 3, t_pad)[:, :T]
    return jnp.transpose(out).reshape(T, n_fields, 3)


class VectorFields:
    """JAX/Pallas port of the GemsNet VectorFields module (no learned params)."""

    def __init__(self, vector_fields_triplets, normalize: bool = True):
        self.vector_fields_triplets = tuple(vector_fields_triplets)
        self.normalize = normalize

    @property
    def triplets_dim(self):
        return len(self.vector_fields_triplets)

    def __call__(self, cell, batch_triplets, e_ij, e_ik):
        return vector_fields_pallas(cell, batch_triplets, e_ij, e_ik,
                                    fields=self.vector_fields_triplets,
                                    normalize=self.normalize)


def _reference(cell, batch_triplets, e_ij, e_ik, fields, normalize):
    c = cell[batch_triplets]                                     # [T,3,3]
    v_ij = jnp.einsum("ti,tij->tj", e_ij, c)
    v_ik = jnp.einsum("ti,tij->tj", e_ik, c)
    outs = []
    for f in fields:
        if f == TripletVectorField.E_IJ:
            v = v_ij
        elif f == TripletVectorField.E_IK:
            v = v_ik
        else:
            v = jnp.cross(v_ij, v_ik)
        if normalize:
            v = v / jnp.maximum(
                jnp.linalg.norm(v, axis=-1, keepdims=True), 1e-12)
        outs.append(v)
    return jnp.stack(outs, axis=1)


if __name__ == "__main__":
    key = jax.random.PRNGKey(0)
    k1, k2, k3, k4 = jax.random.split(key, 4)

    num_graphs = 2
    n_triplets = 200                            # exercises lane/row padding

    cell = (jnp.eye(3, dtype=jnp.float32)[None, :, :]
            + 0.1 * jax.random.normal(k1, (num_graphs, 3, 3), jnp.float32))
    batch_triplets = jax.random.randint(k2, (n_triplets,), 0, num_graphs,
                                        dtype=jnp.int32)
    e_ij = jax.random.normal(k3, (n_triplets, 3), jnp.float32)
    e_ik = jax.random.normal(k4, (n_triplets, 3), jnp.float32)

    fields = (TripletVectorField.E_IJ,
              TripletVectorField.E_IK,
              TripletVectorField.CROSS)
    module = VectorFields(fields, normalize=True)
    assert module.triplets_dim == 3

    out = module(cell, batch_triplets, e_ij, e_ik)
    out = jax.block_until_ready(out)

    ref = _reference(cell, batch_triplets, e_ij, e_ik, fields, normalize=True)
    assert out.shape == (n_triplets, module.triplets_dim, 3)
    assert jnp.max(jnp.abs(out - ref)) < 1e-5

    # Also exercise the un-normalized path.
    out_raw = jax.block_until_ready(
        VectorFields(fields, normalize=False)(cell, batch_triplets, e_ij, e_ik))
    ref_raw = _reference(cell, batch_triplets, e_ij, e_ik, fields, normalize=False)
    assert jnp.max(jnp.abs(out_raw - ref_raw)) < 1e-5

    print("KERNEL_OK")
</pallas_src>

<mosaic_0001>
module attributes {stable_mosaic.version = 11 : i64} {
  func.func @_vector_fields_kernel(%arg0: i32, %arg1: memref<15x8x512xf32, #tpu.memory_space<vmem>>, %arg2: memref<9x8x512xf32, #tpu.memory_space<vmem>>) attributes {dimension_semantics = [#tpu.dimension_semantics<parallel>], iteration_bounds = array<i64: 1>, scalar_prefetch = 0 : i64, scratch_operands = 0 : i64, tpu.core_type = #tpu.core_type<tc>, window_params = [{transform_indices = @transform_0, window_bounds = array<i64: 15, 8, 512>}, {transform_indices = @transform_1, window_bounds = array<i64: 9, 8, 512>}]} {
    %c0 = arith.constant 0 : index
    %c0_0 = arith.constant 0 : index
    %c0_1 = arith.constant 0 : index
    %0 = vector.load %arg1[%c0, %c0_0, %c0_1] : memref<15x8x512xf32, #tpu.memory_space<vmem>>, vector<1x8x512xf32>
    %1 = vector.shape_cast %0 : vector<1x8x512xf32> to vector<8x512xf32>
    %c1 = arith.constant 1 : index
    %c0_2 = arith.constant 0 : index
    %c0_3 = arith.constant 0 : index
    %2 = vector.load %arg1[%c1, %c0_2, %c0_3] : memref<15x8x512xf32, #tpu.memory_space<vmem>>, vector<1x8x512xf32>
    %3 = vector.shape_cast %2 : vector<1x8x512xf32> to vector<8x512xf32>
    %c2 = arith.constant 2 : index
    %c0_4 = arith.constant 0 : index
    %c0_5 = arith.constant 0 : index
    %4 = vector.load %arg1[%c2, %c0_4, %c0_5] : memref<15x8x512xf32, #tpu.memory_space<vmem>>, vector<1x8x512xf32>
    %5 = vector.shape_cast %4 : vector<1x8x512xf32> to vector<8x512xf32>
    %c3 = arith.constant 3 : index
    %c0_6 = arith.constant 0 : index
    %c0_7 = arith.constant 0 : index
    %6 = vector.load %arg1[%c3, %c0_6, %c0_7] : memref<15x8x512xf32, #tpu.memory_space<vmem>>, vector<1x8x512xf32>
    %7 = vector.shape_cast %6 : vector<1x8x512xf32> to vector<8x512xf32>
    %c4 = arith.constant 4 : index
    %c0_8 = arith.constant 0 : index
    %c0_9 = arith.constant 0 : index
    %8 = vector.load %arg1[%c4, %c0_8, %c0_9] : memref<15x8x512xf32, #tpu.memory_space<vmem>>, vector<1x8x512xf32>
    %9 = vector.shape_cast %8 : vector<1x8x512xf32> to vector<8x512xf32>
    %c5 = arith.constant 5 : index
    %c0_10 = arith.constant 0 : index
    %c0_11 = arith.constant 0 : index
    %10 = vector.load %arg1[%c5, %c0_10, %c0_11] : memref<15x8x512xf32, #tpu.memory_space<vmem>>, vector<1x8x512xf32>
    %11 = vector.shape_cast %10 : vector<1x8x512xf32> to vector<8x512xf32>
    %c6 = arith.constant 6 : index
    %c0_12 = arith.constant 0 : index
    %c0_13 = arith.constant 0 : index
    %12 = vector.load %arg1[%c6, %c0_12, %c0_13] : memref<15x8x512xf32, #tpu.memory_space<vmem>>, vector<1x8x512xf32>
    %13 = vector.shape_cast %12 : vector<1x8x512xf32> to vector<8x512xf32>
    %c7 = arith.constant 7 : index
    %c0_14 = arith.constant 0 : index
    %c0_15 = arith.constant 0 : index
    %14 = vector.load %arg1[%c7, %c0_14, %c0_15] : memref<15x8x512xf32, #tpu.memory_space<vmem>>, vector<1x8x512xf32>
    %15 = vector.shape_cast %14 : vector<1x8x512xf32> to vector<8x512xf32>
    %c8 = arith.constant 8 : index
    %c0_16 = arith.constant 0 : index
    %c0_17 = arith.constant 0 : index
    %16 = vector.load %arg1[%c8, %c0_16, %c0_17] : memref<15x8x512xf32, #tpu.memory_space<vmem>>, vector<1x8x512xf32>
    %17 = vector.shape_cast %16 : vector<1x8x512xf32> to vector<8x512xf32>
    %c9 = arith.constant 9 : index
    %c0_18 = arith.constant 0 : index
    %c0_19 = arith.constant 0 : index
    %18 = vector.load %arg1[%c9, %c0_18, %c0_19] : memref<15x8x512xf32, #tpu.memory_space<vmem>>, vector<1x8x512xf32>
    %19 = vector.shape_cast %18 : vector<1x8x512xf32> to vector<8x512xf32>
    %c10 = arith.constant 10 : index
    %c0_20 = arith.constant 0 : index
    %c0_21 = arith.constant 0 : index
    %20 = vector.load %arg1[%c10, %c0_20, %c0_21] : memref<15x8x512xf32, #tpu.memory_space<vmem>>, vector<1x8x512xf32>
    %21 = vector.shape_cast %20 : vector<1x8x512xf32> to vector<8x512xf32>
    %c11 = arith.constant 11 : index
    %c0_22 = arith.constant 0 : index
    %c0_23 = arith.constant 0 : index
    %22 = vector.load %arg1[%c11, %c0_22, %c0_23] : memref<15x8x512xf32, #tpu.memory_space<vmem>>, vector<1x8x512xf32>
    %23 = vector.shape_cast %22 : vector<1x8x512xf32> to vector<8x512xf32>
    %c12 = arith.constant 12 : index
    %c0_24 = arith.constant 0 : index
    %c0_25 = arith.constant 0 : index
    %24 = vector.load %arg1[%c12, %c0_24, %c0_25] : memref<15x8x512xf32, #tpu.memory_space<vmem>>, vector<1x8x512xf32>
    %25 = vector.shape_cast %24 : vector<1x8x512xf32> to vector<8x512xf32>
    %c13 = arith.constant 13 : index
    %c0_26 = arith.constant 0 : index
    %c0_27 = arith.constant 0 : index
    %26 = vector.load %arg1[%c13, %c0_26, %c0_27] : memref<15x8x512xf32, #tpu.memory_space<vmem>>, vector<1x8x512xf32>
    %27 = vector.shape_cast %26 : vector<1x8x512xf32> to vector<8x512xf32>
    %c14 = arith.constant 14 : index
    %c0_28 = arith.constant 0 : index
    %c0_29 = arith.constant 0 : index
    %28 = vector.load %arg1[%c14, %c0_28, %c0_29] : memref<15x8x512xf32, #tpu.memory_space<vmem>>, vector<1x8x512xf32>
    %29 = vector.shape_cast %28 : vector<1x8x512xf32> to vector<8x512xf32>
    %30 = arith.mulf %1, %13 : vector<8x512xf32>
    %31 = arith.mulf %3, %19 : vector<8x512xf32>
    %32 = arith.addf %30, %31 : vector<8x512xf32>
    %33 = arith.mulf %5, %25 : vector<8x512xf32>
    %34 = arith.addf %32, %33 : vector<8x512xf32>
    %35 = arith.mulf %1, %15 : vector<8x512xf32>
    %36 = arith.mulf %3, %21 : vector<8x512xf32>
    %37 = arith.addf %35, %36 : vector<8x512xf32>
    %38 = arith.mulf %5, %27 : vector<8x512xf32>
    %39 = arith.addf %37, %38 : vector<8x512xf32>
    %40 = arith.mulf %1, %17 : vector<8x512xf32>
    %41 = arith.mulf %3, %23 : vector<8x512xf32>
    %42 = arith.addf %40, %41 : vector<8x512xf32>
    %43 = arith.mulf %5, %29 : vector<8x512xf32>
    %44 = arith.addf %42, %43 : vector<8x512xf32>
    %45 = arith.mulf %7, %13 : vector<8x512xf32>
    %46 = arith.mulf %9, %19 : vector<8x512xf32>
    %47 = arith.addf %45, %46 : vector<8x512xf32>
    %48 = arith.mulf %11, %25 : vector<8x512xf32>
    %49 = arith.addf %47, %48 : vector<8x512xf32>
    %50 = arith.mulf %7, %15 : vector<8x512xf32>
    %51 = arith.mulf %9, %21 : vector<8x512xf32>
    %52 = arith.addf %50, %51 : vector<8x512xf32>
    %53 = arith.mulf %11, %27 : vector<8x512xf32>
    %54 = arith.addf %52, %53 : vector<8x512xf32>
    %55 = arith.mulf %7, %17 : vector<8x512xf32>
    %56 = arith.mulf %9, %23 : vector<8x512xf32>
    %57 = arith.addf %55, %56 : vector<8x512xf32>
    %58 = arith.mulf %11, %29 : vector<8x512xf32>
    %59 = arith.addf %57, %58 : vector<8x512xf32>
    %60 = arith.mulf %34, %34 : vector<8x512xf32>
    %61 = arith.mulf %39, %39 : vector<8x512xf32>
    %62 = arith.addf %60, %61 : vector<8x512xf32>
    %63 = arith.mulf %44, %44 : vector<8x512xf32>
    %64 = arith.addf %62, %63 : vector<8x512xf32>
    %cst = arith.constant 1.000000e-24 : f32
    %65 = vector.broadcast %cst : f32 to vector<8x512xf32>
    %66 = arith.maximumf %64, %65 : vector<8x512xf32>
    %67 = math.rsqrt %66 : vector<8x512xf32>
    %68 = arith.mulf %34, %67 : vector<8x512xf32>
    %69 = arith.mulf %39, %67 : vector<8x512xf32>
    %70 = arith.mulf %44, %67 : vector<8x512xf32>
    %c0_30 = arith.constant 0 : index
    %c0_31 = arith.constant 0 : index
    %c0_32 = arith.constant 0 : index
    %71 = vector.load %arg2[%c0_30, %c0_31, %c0_32] : memref<9x8x512xf32, #tpu.memory_space<vmem>>, vector<1x8x512xf32>
    %72 = vector.shape_cast %71 : vector<1x8x512xf32> to vector<8x512xf32>
    %73 = vector.shape_cast %68 : vector<8x512xf32> to vector<1x8x512xf32>
    tpu.vector_store %arg2[%c0_30, %c0_31, %c0_32], %73 {strides = array<i32>} : memref<9x8x512xf32, #tpu.memory_space<vmem>>, vector<1x8x512xf32>,
    %c1_33 = arith.constant 1 : index
    %c0_34 = arith.constant 0 : index
    %c0_35 = arith.constant 0 : index
    %74 = vector.load %arg2[%c1_33, %c0_34, %c0_35] : memref<9x8x512xf32, #tpu.memory_space<vmem>>, vector<1x8x512xf32>
    %75 = vector.shape_cast %74 : vector<1x8x512xf32> to vector<8x512xf32>
    %76 = vector.shape_cast %69 : vector<8x512xf32> to vector<1x8x512xf32>
    tpu.vector_store %arg2[%c1_33, %c0_34, %c0_35], %76 {strides = array<i32>} : memref<9x8x512xf32, #tpu.memory_space<vmem>>, vector<1x8x512xf32>,
    %c2_36 = arith.constant 2 : index
    %c0_37 = arith.constant 0 : index
    %c0_38 = arith.constant 0 : index
    %77 = vector.load %arg2[%c2_36, %c0_37, %c0_38] : memref<9x8x512xf32, #tpu.memory_space<vmem>>, vector<1x8x512xf32>
    %78 = vector.shape_cast %77 : vector<1x8x512xf32> to vector<8x512xf32>
    %79 = vector.shape_cast %70 : vector<8x512xf32> to vector<1x8x512xf32>
    tpu.vector_store %arg2[%c2_36, %c0_37, %c0_38], %79 {strides = array<i32>} : memref<9x8x512xf32, #tpu.memory_space<vmem>>, vector<1x8x512xf32>,
    %80 = arith.mulf %49, %49 : vector<8x512xf32>
    %81 = arith.mulf %54, %54 : vector<8x512xf32>
    %82 = arith.addf %80, %81 : vector<8x512xf32>
    %83 = arith.mulf %59, %59 : vector<8x512xf32>
    %84 = arith.addf %82, %83 : vector<8x512xf32>
    %cst_39 = arith.constant 1.000000e-24 : f32
    %85 = vector.broadcast %cst_39 : f32 to vector<8x512xf32>
    %86 = arith.maximumf %84, %85 : vector<8x512xf32>
    %87 = math.rsqrt %86 : vector<8x512xf32>
    %88 = arith.mulf %49, %87 : vector<8x512xf32>
    %89 = arith.mulf %54, %87 : vector<8x512xf32>
    %90 = arith.mulf %59, %87 : vector<8x512xf32>
    %c3_40 = arith.constant 3 : index
    %c0_41 = arith.constant 0 : index
    %c0_42 = arith.constant 0 : index
    %91 = vector.load %arg2[%c3_40, %c0_41, %c0_42] : memref<9x8x512xf32, #tpu.memory_space<vmem>>, vector<1x8x512xf32>
    %92 = vector.shape_cast %91 : vector<1x8x512xf32> to vector<8x512xf32>
    %93 = vector.shape_cast %88 : vector<8x512xf32> to vector<1x8x512xf32>
    tpu.vector_store %arg2[%c3_40, %c0_41, %c0_42], %93 {strides = array<i32>} : memref<9x8x512xf32, #tpu.memory_space<vmem>>, vector<1x8x512xf32>,
    %c4_43 = arith.constant 4 : index
    %c0_44 = arith.constant 0 : index
    %c0_45 = arith.constant 0 : index
    %94 = vector.load %arg2[%c4_43, %c0_44, %c0_45] : memref<9x8x512xf32, #tpu.memory_space<vmem>>, vector<1x8x512xf32>
    %95 = vector.shape_cast %94 : vector<1x8x512xf32> to vector<8x512xf32>
    %96 = vector.shape_cast %89 : vector<8x512xf32> to vector<1x8x512xf32>
    tpu.vector_store %arg2[%c4_43, %c0_44, %c0_45], %96 {strides = array<i32>} : memref<9x8x512xf32, #tpu.memory_space<vmem>>, vector<1x8x512xf32>,
    %c5_46 = arith.constant 5 : index
    %c0_47 = arith.constant 0 : index
    %c0_48 = arith.constant 0 : index
    %97 = vector.load %arg2[%c5_46, %c0_47, %c0_48] : memref<9x8x512xf32, #tpu.memory_space<vmem>>, vector<1x8x512xf32>
    %98 = vector.shape_cast %97 : vector<1x8x512xf32> to vector<8x512xf32>
    %99 = vector.shape_cast %90 : vector<8x512xf32> to vector<1x8x512xf32>
    tpu.vector_store %arg2[%c5_46, %c0_47, %c0_48], %99 {strides = array<i32>} : memref<9x8x512xf32, #tpu.memory_space<vmem>>, vector<1x8x512xf32>,
    %100 = arith.mulf %39, %59 : vector<8x512xf32>
    %101 = arith.mulf %44, %54 : vector<8x512xf32>
    %102 = arith.subf %100, %101 : vector<8x512xf32>
    %103 = arith.mulf %44, %49 : vector<8x512xf32>
    %104 = arith.mulf %34, %59 : vector<8x512xf32>
    %105 = arith.subf %103, %104 : vector<8x512xf32>
    %106 = arith.mulf %34, %54 : vector<8x512xf32>
    %107 = arith.mulf %39, %49 : vector<8x512xf32>
    %108 = arith.subf %106, %107 : vector<8x512xf32>
    %109 = arith.mulf %102, %102 : vector<8x512xf32>
    %110 = arith.mulf %105, %105 : vector<8x512xf32>
    %111 = arith.addf %109, %110 : vector<8x512xf32>
    %112 = arith.mulf %108, %108 : vector<8x512xf32>
    %113 = arith.addf %111, %112 : vector<8x512xf32>
    %cst_49 = arith.constant 1.000000e-24 : f32
    %114 = vector.broadcast %cst_49 : f32 to vector<8x512xf32>
    %115 = arith.maximumf %113, %114 : vector<8x512xf32>
    %116 = math.rsqrt %115 : vector<8x512xf32>
    %117 = arith.mulf %102, %116 : vector<8x512xf32>
    %118 = arith.mulf %105, %116 : vector<8x512xf32>
    %119 = arith.mulf %108, %116 : vector<8x512xf32>
    %c6_50 = arith.constant 6 : index
    %c0_51 = arith.constant 0 : index
    %c0_52 = arith.constant 0 : index
    %120 = vector.load %arg2[%c6_50, %c0_51, %c0_52] : memref<9x8x512xf32, #tpu.memory_space<vmem>>, vector<1x8x512xf32>
    %121 = vector.shape_cast %120 : vector<1x8x512xf32> to vector<8x512xf32>
    %122 = vector.shape_cast %117 : vector<8x512xf32> to vector<1x8x512xf32>
    tpu.vector_store %arg2[%c6_50, %c0_51, %c0_52], %122 {strides = array<i32>} : memref<9x8x512xf32, #tpu.memory_space<vmem>>, vector<1x8x512xf32>,
    %c7_53 = arith.constant 7 : index
    %c0_54 = arith.constant 0 : index
    %c0_55 = arith.constant 0 : index
    %123 = vector.load %arg2[%c7_53, %c0_54, %c0_55] : memref<9x8x512xf32, #tpu.memory_space<vmem>>, vector<1x8x512xf32>
    %124 = vector.shape_cast %123 : vector<1x8x512xf32> to vector<8x512xf32>
    %125 = vector.shape_cast %118 : vector<8x512xf32> to vector<1x8x512xf32>
    tpu.vector_store %arg2[%c7_53, %c0_54, %c0_55], %125 {strides = array<i32>} : memref<9x8x512xf32, #tpu.memory_space<vmem>>, vector<1x8x512xf32>,
    %c8_56 = arith.constant 8 : index
    %c0_57 = arith.constant 0 : index
    %c0_58 = arith.constant 0 : index
    %126 = vector.load %arg2[%c8_56, %c0_57, %c0_58] : memref<9x8x512xf32, #tpu.memory_space<vmem>>, vector<1x8x512xf32>
    %127 = vector.shape_cast %126 : vector<1x8x512xf32> to vector<8x512xf32>
    %128 = vector.shape_cast %119 : vector<8x512xf32> to vector<1x8x512xf32>
    tpu.vector_store %arg2[%c8_56, %c0_57, %c0_58], %128 {strides = array<i32>} : memref<9x8x512xf32, #tpu.memory_space<vmem>>, vector<1x8x512xf32>,
    return
  }
  func.func @transform_0(%arg0: i32) -> (i32, i32, i32) {
    %c0_i32 = arith.constant 0 : i32
    %c0_i32_0 = arith.constant 0 : i32
    %c0_i32_1 = arith.constant 0 : i32
    return %c0_i32, %arg0, %c0_i32_0 : i32, i32, i32
  }
  func.func @transform_1(%arg0: i32) -> (i32, i32, i32) {
    %c0_i32 = arith.constant 0 : i32
    %c0_i32_0 = arith.constant 0 : i32
    %c0_i32_1 = arith.constant 0 : i32
    return %c0_i32, %arg0, %c0_i32_0 : i32, i32, i32
  }
}

</mosaic_0001>

<llo_original>
// kernel: vector_fields_pallas.1
$region0: #{vector_fields_pallas.1}
  #allocation0 [shape = 'u32[]', space=smem, size = 0x4, offset = 0x4, fixed_abs, tag = 'smem constant byte address 0x4 - core index']
  #allocation1 [shape = 'u32[144,128]{1,0:T(1,128)}', space=vmem, size = 0x12000, scoped, tag = 'internal scratch']
  %s0 = inlined_call_operand.vmem [shape: f32[15,8,512], index: 0, kind: input, shape index: {}]
  %s1 = inlined_call_operand.vmem [shape: f32[9,8,512], index: 1, kind: output, shape index: {}]
  %s2 = sld [smem:[#allocation0]]
  $region14: #{vector_fields_pallas.1} parent=0
    _
  %s4 = ssub.s32 1, %s2
  %s5 = scalar_select 0, %s4, %s2
  // Predicated region
  $region2: #{vector_fields_pallas.1} parent=0 // pred_check
    _
  $region3: #{vector_fields_pallas.1} parent=0 // pred_check_branch
    %7 = sbr.rel (0) target = $region5
  $region4: #{vector_fields_pallas.1} parent=0 // pred_region
    _
  $region5: #{vector_fields_pallas.1} parent=0 // pred_fallthru
    _
  %v8 = vld [vmem:[%s0] sm:$0xff]
  %v9 = vld [vmem:[%s0 + $0x8] sm:$0xff]
  %v10 = vld [vmem:[%s0 + $0x10] sm:$0xff]
  %v11 = vld [vmem:[%s0 + $0x18] sm:$0xff]
  %s12 = scalar_lea.vmem %s0, 32
  %v13 = vld [vmem:[%s12] sm:$0xff]
  %v14 = vld [vmem:[%s12 + $0x8] sm:$0xff]
  %v15 = vld [vmem:[%s12 + $0x10] sm:$0xff]
  %v16 = vld [vmem:[%s12 + $0x18] sm:$0xff]
  %s17 = scalar_lea.vmem %s0, 64
  %v18 = vld [vmem:[%s17] sm:$0xff]
  %v19 = vld [vmem:[%s17 + $0x8] sm:$0xff]
  %v20 = vld [vmem:[%s17 + $0x10] sm:$0xff]
  %v21 = vld [vmem:[%s17 + $0x18] sm:$0xff]
  %s22 = scalar_lea.vmem %s0, 96
  %v23 = vld [vmem:[%s22] sm:$0xff]
  %v24 = vld [vmem:[%s22 + $0x8] sm:$0xff]
  %v25 = vld [vmem:[%s22 + $0x10] sm:$0xff]
  %v26 = vld [vmem:[%s22 + $0x18] sm:$0xff]
  %s27 = scalar_lea.vmem %s0, 128
  %v28 = vld [vmem:[%s27] sm:$0xff]
  %v29 = vld [vmem:[%s27 + $0x8] sm:$0xff]
  %v30 = vld [vmem:[%s27 + $0x10] sm:$0xff]
  %v31 = vld [vmem:[%s27 + $0x18] sm:$0xff]
  %s32 = scalar_lea.vmem %s0, 160
  %v33 = vld [vmem:[%s32] sm:$0xff]
  %v34 = vld [vmem:[%s32 + $0x8] sm:$0xff]
  %v35 = vld [vmem:[%s32 + $0x10] sm:$0xff]
  %v36 = vld [vmem:[%s32 + $0x18] sm:$0xff]
  %s37 = scalar_lea.vmem %s0, 192
  %v38 = vld [vmem:[%s37] sm:$0xff]
  %v39 = vld [vmem:[%s37 + $0x8] sm:$0xff]
  %v40 = vld [vmem:[%s37 + $0x10] sm:$0xff]
  %v41 = vld [vmem:[%s37 + $0x18] sm:$0xff]
  %s42 = scalar_lea.vmem %s0, 224
  %v43 = vld [vmem:[%s42] sm:$0xff]
  %v44 = vld [vmem:[%s42 + $0x8] sm:$0xff]
  %v45 = vld [vmem:[%s42 + $0x10] sm:$0xff]
  %v46 = vld [vmem:[%s42 + $0x18] sm:$0xff]
  %s47 = scalar_lea.vmem %s0, 256
  %v48 = vld [vmem:[%s47] sm:$0xff]
  %v49 = vld [vmem:[%s47 + $0x8] sm:$0xff]
  %v50 = vld [vmem:[%s47 + $0x10] sm:$0xff]
  %v51 = vld [vmem:[%s47 + $0x18] sm:$0xff]
  %s52 = scalar_lea.vmem %s0, 288
  %v53 = vld [vmem:[%s52] sm:$0xff]
  %v54 = vld [vmem:[%s52 + $0x8] sm:$0xff]
  %v55 = vld [vmem:[%s52 + $0x10] sm:$0xff]
  %v56 = vld [vmem:[%s52 + $0x18] sm:$0xff]
  %s57 = scalar_lea.vmem %s0, 320
  %v58 = vld [vmem:[%s57] sm:$0xff]
  %v59 = vld [vmem:[%s57 + $0x8] sm:$0xff]
  %v60 = vld [vmem:[%s57 + $0x10] sm:$0xff]
  %v61 = vld [vmem:[%s57 + $0x18] sm:$0xff]
  %s62 = scalar_lea.vmem %s0, 352
  %v63 = vld [vmem:[%s62] sm:$0xff]
  %v64 = vld [vmem:[%s62 + $0x8] sm:$0xff]
  %v65 = vld [vmem:[%s62 + $0x10] sm:$0xff]
  %v66 = vld [vmem:[%s62 + $0x18] sm:$0xff]
  %s67 = scalar_lea.vmem %s0, 384
  %v68 = vld [vmem:[%s67] sm:$0xff]
  %v69 = vld [vmem:[%s67 + $0x8] sm:$0xff]
  %v70 = vld [vmem:[%s67 + $0x10] sm:$0xff]
  %v71 = vld [vmem:[%s67 + $0x18] sm:$0xff]
  %s72 = scalar_lea.vmem %s0, 416
  %v73 = vld [vmem:[%s72] sm:$0xff]
  %v74 = vld [vmem:[%s72 + $0x8] sm:$0xff]
  %v75 = vld [vmem:[%s72 + $0x10] sm:$0xff]
  %v76 = vld [vmem:[%s72 + $0x18] sm:$0xff]
  %s77 = scalar_lea.vmem %s0, 448
  %v78 = vld [vmem:[%s77] sm:$0xff]
  %v79 = vld [vmem:[%s77 + $0x8] sm:$0xff]
  %v80 = vld [vmem:[%s77 + $0x10] sm:$0xff]
  %v81 = vld [vmem:[%s77 + $0x18] sm:$0xff]
  %v82 = vmul.f32 %v8, %v38
  %v83 = vmul.f32 %v9, %v39
  %v84 = vmul.f32 %v10, %v40
  %v85 = vmul.f32 %v11, %v41
  %v86 = vmul.f32 %v13, %v53
  %v87 = vmul.f32 %v14, %v54
  %v88 = vmul.f32 %v15, %v55
  %v89 = vmul.f32 %v16, %v56
  %v90 = vadd.f32 %v82, %v86
  %v91 = vadd.f32 %v83, %v87
  %v92 = vadd.f32 %v84, %v88
  %v93 = vadd.f32 %v85, %v89
  %v94 = vmul.f32 %v18, %v68
  %v95 = vmul.f32 %v19, %v69
  %v96 = vmul.f32 %v20, %v70
  %v97 = vmul.f32 %v21, %v71
  %v98 = vadd.f32 %v90, %v94
  %v99 = vadd.f32 %v91, %v95
  %v100 = vadd.f32 %v92, %v96
  %v101 = vadd.f32 %v93, %v97
  %v102 = vmul.f32 %v8, %v43
  %v103 = vmul.f32 %v9, %v44
  %v104 = vmul.f32 %v10, %v45
  %v105 = vmul.f32 %v11, %v46
  %v106 = vmul.f32 %v13, %v58
  %v107 = vmul.f32 %v14, %v59
  %v108 = vmul.f32 %v15, %v60
  %v109 = vmul.f32 %v16, %v61
  %v110 = vadd.f32 %v102, %v106
  %v111 = vadd.f32 %v103, %v107
  %v112 = vadd.f32 %v104, %v108
  %v113 = vadd.f32 %v105, %v109
  %v114 = vmul.f32 %v18, %v73
  %v115 = vmul.f32 %v19, %v74
  %v116 = vmul.f32 %v20, %v75
  %v117 = vmul.f32 %v21, %v76
  %v118 = vadd.f32 %v110, %v114
  %v119 = vadd.f32 %v111, %v115
  %v120 = vadd.f32 %v112, %v116
  %v121 = vadd.f32 %v113, %v117
  %v122 = vmul.f32 %v8, %v48
  %v123 = vmul.f32 %v9, %v49
  %v124 = vmul.f32 %v10, %v50
  %v125 = vmul.f32 %v11, %v51
  %v126 = vmul.f32 %v13, %v63
  %v127 = vmul.f32 %v14, %v64
  %v128 = vmul.f32 %v15, %v65
  %v129 = vmul.f32 %v16, %v66
  %v130 = vadd.f32 %v122, %v126
  %v131 = vadd.f32 %v123, %v127
  %v132 = vadd.f32 %v124, %v128
  %v133 = vadd.f32 %v125, %v129
  %v134 = vmul.f32 %v18, %v78
  %v135 = vmul.f32 %v19, %v79
  %v136 = vmul.f32 %v20, %v80
  %v137 = vmul.f32 %v21, %v81
  %v138 = vadd.f32 %v130, %v134
  %v139 = vadd.f32 %v131, %v135
  %v140 = vadd.f32 %v132, %v136
  %v141 = vadd.f32 %v133, %v137
  %v142 = vmul.f32 %v23, %v38
  %v143 = vmul.f32 %v24, %v39
  %v144 = vmul.f32 %v25, %v40
  %v145 = vmul.f32 %v26, %v41
  %v146 = vmul.f32 %v28, %v53
  %v147 = vmul.f32 %v29, %v54
  %v148 = vmul.f32 %v30, %v55
  %v149 = vmul.f32 %v31, %v56
  %v150 = vadd.f32 %v142, %v146
  %v151 = vadd.f32 %v143, %v147
  %v152 = vadd.f32 %v144, %v148
  %v153 = vadd.f32 %v145, %v149
  %v154 = vmul.f32 %v33, %v68
  %v155 = vmul.f32 %v34, %v69
  %v156 = vmul.f32 %v35, %v70
  %v157 = vmul.f32 %v36, %v71
  %v158 = vadd.f32 %v150, %v154
  %v159 = vadd.f32 %v151, %v155
  %v160 = vadd.f32 %v152, %v156
  %v161 = vadd.f32 %v153, %v157
  %v162 = vmul.f32 %v23, %v43
  %v163 = vmul.f32 %v24, %v44
  %v164 = vmul.f32 %v25, %v45
  %v165 = vmul.f32 %v26, %v46
  %v166 = vmul.f32 %v28, %v58
  %v167 = vmul.f32 %v29, %v59
  %v168 = vmul.f32 %v30, %v60
  %v169 = vmul.f32 %v31, %v61
  %v170 = vadd.f32 %v162, %v166
  %v171 = vadd.f32 %v163, %v167
  %v172 = vadd.f32 %v164, %v168
  %v173 = vadd.f32 %v165, %v169
  %v174 = vmul.f32 %v33, %v73
  %v175 = vmul.f32 %v34, %v74
  %v176 = vmul.f32 %v35, %v75
  %v177 = vmul.f32 %v36, %v76
  %v178 = vadd.f32 %v170, %v174
  %v179 = vadd.f32 %v171, %v175
  %v180 = vadd.f32 %v172, %v176
  %v181 = vadd.f32 %v173, %v177
  %v182 = vmul.f32 %v23, %v48
  %v183 = vmul.f32 %v24, %v49
  %v184 = vmul.f32 %v25, %v50
  %v185 = vmul.f32 %v26, %v51
  %v186 = vmul.f32 %v28, %v63
  %v187 = vmul.f32 %v29, %v64
  %v188 = vmul.f32 %v30, %v65
  %v189 = vmul.f32 %v31, %v66
  %v190 = vadd.f32 %v182, %v186
  %v191 = vadd.f32 %v183, %v187
  %v192 = vadd.f32 %v184, %v188
  %v193 = vadd.f32 %v185, %v189
  %v194 = vmul.f32 %v33, %v78
  %v195 = vmul.f32 %v34, %v79
  %v196 = vmul.f32 %v35, %v80
  %v197 = vmul.f32 %v36, %v81
  %v198 = vadd.f32 %v190, %v194
  %v199 = vadd.f32 %v191, %v195
  %v200 = vadd.f32 %v192, %v196
  %v201 = vadd.f32 %v193, %v197
  %v202 = vmul.f32 %v98, %v98
  %v203 = vmul.f32 %v99, %v99
  %v204 = vmul.f32 %v100, %v100
  %v205 = vmul.f32 %v101, %v101
  %v206 = vmul.f32 %v118, %v118
  %v207 = vmul.f32 %v119, %v119
  %v208 = vmul.f32 %v120, %v120
  %v209 = vmul.f32 %v121, %v121
  %v210 = vadd.f32 %v202, %v206
  %v211 = vadd.f32 %v203, %v207
  %v212 = vadd.f32 %v204, %v208
  %v213 = vadd.f32 %v205, %v209
  %v214 = vmul.f32 %v138, %v138
  %v215 = vmul.f32 %v139, %v139
  %v216 = vmul.f32 %v140, %v140
  %v217 = vmul.f32 %v141, %v141
  %v218 = vadd.f32 %v210, %v214
  %v219 = vadd.f32 %v211, %v215
  %v220 = vadd.f32 %v212, %v216
  %v221 = vadd.f32 %v213, %v217
  %v222 = vmax.f32 %v218, 1e-24
  %v223 = vmax.f32 %v219, 1e-24
  %v224 = vmax.f32 %v220, 1e-24
  %v225 = vmax.f32 %v221, 1e-24
  %v226 = vrsqrt.pop %v222
  %v227 = vrsqrt.pop %v223
  %v228 = vrsqrt.pop %v224
  %v229 = vrsqrt.pop %v225
  %v230 = vmul.f32 %v98, %v226
  %v231 = vmul.f32 %v99, %v227
  %v232 = vmul.f32 %v100, %v228
  %v233 = vmul.f32 %v101, %v229
  %v234 = vmul.f32 %v118, %v226
  %v235 = vmul.f32 %v119, %v227
  %v236 = vmul.f32 %v120, %v228
  %v237 = vmul.f32 %v121, %v229
  %v238 = vmul.f32 %v138, %v226
  %v239 = vmul.f32 %v139, %v227
  %v240 = vmul.f32 %v140, %v228
  %v241 = vmul.f32 %v141, %v229
  %242 = vst [vmem:[%s1] sm:$0xff] %v230
  %243 = vst [vmem:[%s1 + $0x8] sm:$0xff] %v231
  %244 = vst [vmem:[%s1 + $0x10] sm:$0xff] %v232
  %245 = vst [vmem:[%s1 + $0x18] sm:$0xff] %v233
  %s246 = scalar_lea.vmem %s1, 32
  %247 = vst [vmem:[%s246] sm:$0xff] %v234
  %248 = vst [vmem:[%s246 + $0x8] sm:$0xff] %v235
  %249 = vst [vmem:[%s246 + $0x10] sm:$0xff] %v236
  %250 = vst [vmem:[%s246 + $0x18] sm:$0xff] %v237
  %s251 = scalar_lea.vmem %s1, 64
  %252 = vst [vmem:[%s251] sm:$0xff] %v238
  %253 = vst [vmem:[%s251 + $0x8] sm:$0xff] %v239
  %254 = vst [vmem:[%s251 + $0x10] sm:$0xff] %v240
  %255 = vst [vmem:[%s251 + $0x18] sm:$0xff] %v241
  %v256 = vmul.f32 %v158, %v158
  %v257 = vmul.f32 %v159, %v159
  %v258 = vmul.f32 %v160, %v160
  %v259 = vmul.f32 %v161, %v161
  %v260 = vmul.f32 %v178, %v178
  %v261 = vmul.f32 %v179, %v179
  %v262 = vmul.f32 %v180, %v180
  %v263 = vmul.f32 %v181, %v181
  %v264 = vadd.f32 %v256, %v260
  %v265 = vadd.f32 %v257, %v261
  %v266 = vadd.f32 %v258, %v262
  %v267 = vadd.f32 %v259, %v263
  %v268 = vmul.f32 %v198, %v198
  %v269 = vmul.f32 %v199, %v199
  %v270 = vmul.f32 %v200, %v200
  %v271 = vmul.f32 %v201, %v201
  %v272 = vadd.f32 %v264, %v268
  %v273 = vadd.f32 %v265, %v269
  %v274 = vadd.f32 %v266, %v270
  %v275 = vadd.f32 %v267, %v271
  %v276 = vmax.f32 %v272, 1e-24
  %v277 = vmax.f32 %v273, 1e-24
  %v278 = vmax.f32 %v274, 1e-24
  %v279 = vmax.f32 %v275, 1e-24
  %v280 = vrsqrt.pop %v276
  %v281 = vrsqrt.pop %v277
  %v282 = vrsqrt.pop %v278
  %v283 = vrsqrt.pop %v279
  %v284 = vmul.f32 %v158, %v280
  %v285 = vmul.f32 %v159, %v281
  %v286 = vmul.f32 %v160, %v282
  %v287 = vmul.f32 %v161, %v283
  %v288 = vmul.f32 %v178, %v280
  %v289 = vmul.f32 %v179, %v281
  %v290 = vmul.f32 %v180, %v282
  %v291 = vmul.f32 %v181, %v283
  %v292 = vmul.f32 %v198, %v280
  %v293 = vmul.f32 %v199, %v281
  %v294 = vmul.f32 %v200, %v282
  %v295 = vmul.f32 %v201, %v283
  %s296 = scalar_lea.vmem %s1, 96
  %297 = vst [vmem:[%s296] sm:$0xff] %v284
  %298 = vst [vmem:[%s296 + $0x8] sm:$0xff] %v285
  %299 = vst [vmem:[%s296 + $0x10] sm:$0xff] %v286
  %300 = vst [vmem:[%s296 + $0x18] sm:$0xff] %v287
  %s301 = scalar_lea.vmem %s1, 128
  %302 = vst [vmem:[%s301] sm:$0xff] %v288
  %303 = vst [vmem:[%s301 + $0x8] sm:$0xff] %v289
  %304 = vst [vmem:[%s301 + $0x10] sm:$0xff] %v290
  %305 = vst [vmem:[%s301 + $0x18] sm:$0xff] %v291
  %s306 = scalar_lea.vmem %s1, 160
  %307 = vst [vmem:[%s306] sm:$0xff] %v292
  %308 = vst [vmem:[%s306 + $0x8] sm:$0xff] %v293
  %309 = vst [vmem:[%s306 + $0x10] sm:$0xff] %v294
  %310 = vst [vmem:[%s306 + $0x18] sm:$0xff] %v295
  %v311 = vmul.f32 %v118, %v198
  %v312 = vmul.f32 %v119, %v199
  %v313 = vmul.f32 %v120, %v200
  %v314 = vmul.f32 %v121, %v201
  %v315 = vmul.f32 %v138, %v178
  %v316 = vmul.f32 %v139, %v179
  %v317 = vmul.f32 %v140, %v180
  %v318 = vmul.f32 %v141, %v181
  %v319 = vsub.f32 %v311, %v315
  %v320 = vsub.f32 %v312, %v316
  %v321 = vsub.f32 %v313, %v317
  %v322 = vsub.f32 %v314, %v318
  %v323 = vmul.f32 %v138, %v158
  %v324 = vmul.f32 %v139, %v159
  %v325 = vmul.f32 %v140, %v160
  %v326 = vmul.f32 %v141, %v161
  %v327 = vmul.f32 %v98, %v198
  %v328 = vmul.f32 %v99, %v199
  %v329 = vmul.f32 %v100, %v200
  %v330 = vmul.f32 %v101, %v201
  %v331 = vsub.f32 %v323, %v327
  %v332 = vsub.f32 %v324, %v328
  %v333 = vsub.f32 %v325, %v329
  %v334 = vsub.f32 %v326, %v330
  %v335 = vmul.f32 %v98, %v178
  %v336 = vmul.f32 %v99, %v179
  %v337 = vmul.f32 %v100, %v180
  %v338 = vmul.f32 %v101, %v181
  %v339 = vmul.f32 %v118, %v158
  %v340 = vmul.f32 %v119, %v159
  %v341 = vmul.f32 %v120, %v160
  %v342 = vmul.f32 %v121, %v161
  %v343 = vsub.f32 %v335, %v339
  %v344 = vsub.f32 %v336, %v340
  %v345 = vsub.f32 %v337, %v341
  %v346 = vsub.f32 %v338, %v342
  %v347 = vmul.f32 %v319, %v319
  %v348 = vmul.f32 %v320, %v320
  %v349 = vmul.f32 %v321, %v321
  %v350 = vmul.f32 %v322, %v322
  %v351 = vmul.f32 %v331, %v331
  %v352 = vmul.f32 %v332, %v332
  %v353 = vmul.f32 %v333, %v333
  %v354 = vmul.f32 %v334, %v334
  %v355 = vadd.f32 %v347, %v351
  %v356 = vadd.f32 %v348, %v352
  %v357 = vadd.f32 %v349, %v353
  %v358 = vadd.f32 %v350, %v354
  %v359 = vmul.f32 %v343, %v343
  %v360 = vmul.f32 %v344, %v344
  %v361 = vmul.f32 %v345, %v345
  %v362 = vmul.f32 %v346, %v346
  %v363 = vadd.f32 %v355, %v359
  %v364 = vadd.f32 %v356, %v360
  %v365 = vadd.f32 %v357, %v361
  %v366 = vadd.f32 %v358, %v362
  %v367 = vmax.f32 %v363, 1e-24
  %v368 = vmax.f32 %v364, 1e-24
  %v369 = vmax.f32 %v365, 1e-24
  %v370 = vmax.f32 %v366, 1e-24
  %v371 = vrsqrt.pop %v367
  %v372 = vrsqrt.pop %v368
  %v373 = vrsqrt.pop %v369
  %v374 = vrsqrt.pop %v370
  %v375 = vmul.f32 %v319, %v371
  %v376 = vmul.f32 %v320, %v372
  %v377 = vmul.f32 %v321, %v373
  %v378 = vmul.f32 %v322, %v374
  %v379 = vmul.f32 %v331, %v371
  %v380 = vmul.f32 %v332, %v372
  %v381 = vmul.f32 %v333, %v373
  %v382 = vmul.f32 %v334, %v374
  %v383 = vmul.f32 %v343, %v371
  %v384 = vmul.f32 %v344, %v372
  %v385 = vmul.f32 %v345, %v373
  %v386 = vmul.f32 %v346, %v374
  %s387 = scalar_lea.vmem %s1, 192
  %388 = vst [vmem:[%s387] sm:$0xff] %v375
  %389 = vst [vmem:[%s387 + $0x8] sm:$0xff] %v376
  %390 = vst [vmem:[%s387 + $0x10] sm:$0xff] %v377
  %391 = vst [vmem:[%s387 + $0x18] sm:$0xff] %v378
  %s392 = scalar_lea.vmem %s1, 224
  %393 = vst [vmem:[%s392] sm:$0xff] %v379
  %394 = vst [vmem:[%s392 + $0x8] sm:$0xff] %v380
  %395 = vst [vmem:[%s392 + $0x10] sm:$0xff] %v381
  %396 = vst [vmem:[%s392 + $0x18] sm:$0xff] %v382
  %s397 = scalar_lea.vmem %s1, 256
  %398 = vst [vmem:[%s397] sm:$0xff] %v383
  %399 = vst [vmem:[%s397 + $0x8] sm:$0xff] %v384
  %400 = vst [vmem:[%s397 + $0x10] sm:$0xff] %v385
  %401 = vst [vmem:[%s397 + $0x18] sm:$0xff] %v386
  // Predicated region
  $region6: #{vector_fields_pallas.1} parent=0 // pred_check
    _
  $region7: #{vector_fields_pallas.1} parent=0 // pred_check_branch
    %403 = sbr.rel (0) target = $region9
  $region8: #{vector_fields_pallas.1} parent=0 // pred_region
    _
  $region9: #{vector_fields_pallas.1} parent=0 // pred_fallthru
    _
  // Predicated region
  $region10: #{vector_fields_pallas.1} parent=0 // pred_check
    _
  $region11: #{vector_fields_pallas.1} parent=0 // pred_check_branch
    %405 = sbr.rel (0) target = $region13
  $region12: #{vector_fields_pallas.1} parent=0 // pred_region
    _
  $region13: #{vector_fields_pallas.1} parent=0 // pred_fallthru
    _

</llo_original>
